<compile_context>
chip_gen: v5e
topology: v5e:2x2
jax: 0.10.0
libtpu: 0.0.40
codegen_flags: <defaults>
</compile_context>

<pallas_src>
import functools
import math

import jax
import jax.numpy as jnp
from jax import lax
from jax.experimental import pallas as pl
from jax.experimental.pallas import tpu as pltpu

KH = KW = 3      # Conv2dBlock(kernel_size=3) inside ResidualBlock.main0/main1
PAD = 1          # padding=1


# ---------------------------------------------------------------------------
# Fused kernel: relu -> conv3x3 -> relu -> conv3x3 -> (+x)/sqrt(2)
# ---------------------------------------------------------------------------
def _fused_residual_kernel(xp_ref, w0_ref, w1_ref, o_ref, xr_ref, y_ref, *,
                           H, scale):
    """One batch item per grid step.

    xp_ref: (Hp, W*C)        H-padded, W-folded input (pre-ReLU)
    w0/w1_ref: (KH, W*C, W*C) banded per-tap weight matrices
    o_ref:  (H, W*C)         output rows (lane-dense)
    xr_ref: (Hp, W*C) scratch: relu(x) in the MXU operand dtype
    y_ref:  (Hp, W*C) scratch: relu(conv0) with a zero 1-row halo
    """
    WC = o_ref.shape[-1]
    f32 = jnp.float32
    cdt = xr_ref.dtype

    # ReLU once on the whole resident padded image (relu of the zero halo is
    # still zero, so the halo stays valid) -> VMEM scratch.
    xr_ref[...] = jnp.maximum(xp_ref[...], 0.0).astype(cdt)

    # main0: 3x3 conv as three banded matmuls (K = W*C, MXU-aligned).
    acc0 = jnp.zeros((H, WC), f32)
    for kh in range(KH):                                   # unrolled, static
        acc0 = acc0 + jnp.dot(xr_ref[pl.ds(kh, H), :], w0_ref[kh],
                              preferred_element_type=f32)

    # Intermediate stays in VMEM: zero the 1-row halos, write relu(conv0) into
    # the interior so main1's taps see correct zero padding.
    y_ref[pl.ds(0, 1), :] = jnp.zeros((1, WC), cdt)
    y_ref[pl.ds(H + PAD, 1), :] = jnp.zeros((1, WC), cdt)
    y_ref[pl.ds(PAD, H), :] = jnp.maximum(acc0, 0.0).astype(cdt)

    # main1 fused with the residual epilogue.
    acc1 = jnp.zeros((H, WC), f32)
    for kh in range(KH):
        acc1 = acc1 + jnp.dot(y_ref[pl.ds(kh, H), :], w1_ref[kh],
                              preferred_element_type=f32)

    res = xp_ref[pl.ds(PAD, H), :].astype(f32)             # original x rows
    o_ref[...] = ((res + acc1) * scale).astype(o_ref.dtype)


def _fused_call(xp_folded, w0m, w1m, *, compute_dtype=jnp.float32):
    """xp_folded: (N, Hp, W*C) H-padded folded input; w*m: (KH, W*C, W*C)."""
    N, Hp, WC = xp_folded.shape
    H = Hp - 2 * PAD
    scale = 1.0 / math.sqrt(2.0)

    grid = (N,)
    x_spec = pl.BlockSpec((None, Hp, WC), lambda n: (n, 0, 0))
    w_spec = pl.BlockSpec((KH, WC, WC), lambda n: (0, 0, 0))
    o_spec = pl.BlockSpec((None, H, WC), lambda n: (n, 0, 0))

    out_shape = jax.ShapeDtypeStruct((N, H, WC), xp_folded.dtype)

    itemsize = jnp.dtype(xp_folded.dtype).itemsize
    # Note: flops counts the banded (zero-augmented) K, which overstates true
    # conv FLOPs by ~W/3; it is only a scheduler hint.
    flops = 2 * 2 * N * H * WC * WC * KH
    bytes_accessed = (xp_folded.size + N * H * WC) * itemsize + \
                     (w0m.size + w1m.size) * jnp.dtype(w0m.dtype).itemsize

    compiler_params = pltpu.CompilerParams(
        dimension_semantics=("parallel",),      # N images split across v7x TCs
        vmem_limit_bytes=32 * 1024 * 1024)
    cost = pl.CostEstimate(flops=int(flops), transcendentals=0,
                           bytes_accessed=int(bytes_accessed))

    return pl.pallas_call(
        functools.partial(_fused_residual_kernel, H=H, scale=scale),
        out_shape=out_shape,
        grid=grid,
        in_specs=[x_spec, w_spec, w_spec],
        out_specs=o_spec,
        scratch_shapes=[pltpu.VMEM((Hp, WC), compute_dtype),   # relu(x)
                        pltpu.VMEM((Hp, WC), compute_dtype)],  # relu(conv0)
        compiler_params=compiler_params,
        cost_estimate=cost,
    )(xp_folded, w0m, w1m)


# ---------------------------------------------------------------------------
# Parameter packing (hoisted out of the forward path) and layout glue
# ---------------------------------------------------------------------------
def _pack_banded_weight(weight, W, dtype):
    """(Cout, Cin, KH, KW) torch-layout weight -> (KH, W*Cin, W*Cout).

    wmat[kh, wi*Cin + ci, wo*Cout + co] = weight[co, ci, kh, wi - wo + PAD]
    when |wi - wo| <= 1, else 0.  Edge taps (wo=0, wo=W-1) are truncated,
    which is exactly zero padding in W -- no lane pad needed, K = W*Cin.
    """
    Cout, Cin, _, _ = weight.shape
    w_t = jnp.transpose(weight, (2, 3, 1, 0))             # (KH, KW, Cin, Cout)
    wi = jnp.arange(W)[:, None]
    wo = jnp.arange(W)[None, :]
    kw = wi - wo + PAD                                     # (W, W)
    valid = (kw >= 0) & (kw < KW)
    blocks = w_t[:, jnp.clip(kw, 0, KW - 1)]               # (KH, W, W, Cin, Cout)
    blocks = blocks * valid[None, :, :, None, None].astype(w_t.dtype)
    wmat = jnp.transpose(blocks, (0, 1, 3, 2, 4))          # (KH, W, Cin, W, Cout)
    return wmat.reshape(KH, W * Cin, W * Cout).astype(dtype)


def pack_residual_block_weights(w0, w1, W, dtype=jnp.float32):
    """Pack once at parameter-load time (not in the per-forward hot path)."""
    return _pack_banded_weight(w0, W, dtype), _pack_banded_weight(w1, W, dtype)


def _fold(x_nchw):
    """NCHW -> W-folded (N, H, W*C)."""
    N, C, H, W = x_nchw.shape
    return jnp.transpose(x_nchw, (0, 2, 3, 1)).reshape(N, H, W * C)


def residual_block(x_nchw, w0m, w1m, *, compute_dtype=jnp.float32):
    """ResidualBlock forward with pre-packed weights.

    x_nchw: (N, C, H, W); w0m/w1m: (KH, W*C, W*C); returns (N, C, H, W).
    """
    N, C, H, W = x_nchw.shape
    x_f = _fold(x_nchw)                                          # (N, H, W*C)
    xp = jnp.pad(x_f, ((0, 0), (PAD, PAD), (0, 0)))              # H halo only
    out_f = _fused_call(xp, w0m, w1m, compute_dtype=compute_dtype)
    return jnp.transpose(out_f.reshape(N, H, W, C), (0, 3, 1, 2))


# ---------------------------------------------------------------------------
# Pure-JAX reference and self-test
# ---------------------------------------------------------------------------
def _reference(x, w0, w1):
    def conv_block(h, w):
        h = jnp.maximum(h, 0.0)
        return lax.conv_general_dilated(
            h, w, window_strides=(1, 1),
            padding=((PAD, PAD), (PAD, PAD)),
            dimension_numbers=("NCHW", "OIHW", "NCHW"))
    res = conv_block(conv_block(x, w0), w1)
    return (x + res) / math.sqrt(2.0)


if __name__ == "__main__":
    key = jax.random.PRNGKey(0)
    k_x, k_w0, k_w1 = jax.random.split(key, 3)

    # dim_in == dim_out == 8 so the (x + res)/sqrt(2) path is active, and
    # W*C = 16*8 = 128 gives exactly lane-dense folded rows.
    N, C, H, W = 2, 8, 16, 16
    x = jax.random.normal(k_x, (N, C, H, W), dtype=jnp.float32)
    bound = 1.0 / (C * KH * KW) ** 0.5                  # kaiming-uniform-like
    w0 = jax.random.uniform(k_w0, (C, C, KH, KW), minval=-bound, maxval=bound,
                            dtype=jnp.float32)
    w1 = jax.random.uniform(k_w1, (C, C, KH, KW), minval=-bound, maxval=bound,
                            dtype=jnp.float32)

    # Weight packing hoisted out of the forward path.
    # (On v6e/v7x: pack with dtype=jnp.bfloat16 and pass
    #  compute_dtype=jnp.bfloat16 for native-rate MXU; loosen tol to ~1e-2.)
    w0m, w1m = pack_residual_block_weights(w0, w1, W, dtype=jnp.float32)

    out = jax.block_until_ready(residual_block(x, w0m, w1m))
    ref = jax.block_until_ready(_reference(x, w0, w1))

    assert out.shape == (N, C, H, W)
    assert jnp.allclose(out, ref, atol=1e-3, rtol=1e-3), "mismatch vs reference"
    print("KERNEL_OK")
</pallas_src>

<mosaic_0001>
module attributes {stable_mosaic.version = 11 : i64} {
  func.func @_fused_residual_kernel(%arg0: i32, %arg1: memref<1x18x128xf32, #tpu.memory_space<vmem>>, %arg2: memref<3x128x128xf32, #tpu.memory_space<vmem>>, %arg3: memref<3x128x128xf32, #tpu.memory_space<vmem>>, %arg4: memref<1x16x128xf32, #tpu.memory_space<vmem>>, %arg5: memref<18x128xf32, #tpu.memory_space<vmem>>, %arg6: memref<18x128xf32, #tpu.memory_space<vmem>>) attributes {dimension_semantics = [#tpu.dimension_semantics<parallel>], iteration_bounds = array<i64: 2>, scalar_prefetch = 0 : i64, scratch_operands = 2 : i64, tpu.core_type = #tpu.core_type<tc>, window_params = [{transform_indices = @transform_0, window_bounds = array<i64: 1, 18, 128>}, {pipeline_mode = #tpu.pipeline_mode<synchronous>, transform_indices = @transform_1, window_bounds = array<i64: 3, 128, 128>}, {pipeline_mode = #tpu.pipeline_mode<synchronous>, transform_indices = @transform_2, window_bounds = array<i64: 3, 128, 128>}, {transform_indices = @transform_3, window_bounds = array<i64: 1, 16, 128>}]} {
    %c0 = arith.constant 0 : index
    %c0_0 = arith.constant 0 : index
    %c0_1 = arith.constant 0 : index
    %0 = vector.load %arg1[%c0, %c0_0, %c0_1] : memref<1x18x128xf32, #tpu.memory_space<vmem>>, vector<1x18x128xf32>
    %1 = vector.shape_cast %0 : vector<1x18x128xf32> to vector<18x128xf32>
    %cst = arith.constant 0.000000e+00 : f32
    %2 = vector.broadcast %cst : f32 to vector<18x128xf32>
    %3 = arith.maximumf %1, %2 : vector<18x128xf32>
    %c0_2 = arith.constant 0 : index
    %c0_3 = arith.constant 0 : index
    %4 = vector.load %arg5[%c0_2, %c0_3] : memref<18x128xf32, #tpu.memory_space<vmem>>, vector<18x128xf32>
    tpu.vector_store %arg5[%c0_2, %c0_3], %3 {strides = array<i32>} : memref<18x128xf32, #tpu.memory_space<vmem>>, vector<18x128xf32>,
    %cst_4 = arith.constant 0.000000e+00 : f32
    %5 = vector.broadcast %cst_4 : f32 to vector<16x128xf32>
    %c0_5 = arith.constant 0 : index
    %c0_6 = arith.constant 0 : index
    %6 = vector.load %arg5[%c0_5, %c0_6] : memref<18x128xf32, #tpu.memory_space<vmem>>, vector<16x128xf32>
    %c0_7 = arith.constant 0 : index
    %c0_8 = arith.constant 0 : index
    %c0_9 = arith.constant 0 : index
    %7 = vector.load %arg2[%c0_7, %c0_8, %c0_9] : memref<3x128x128xf32, #tpu.memory_space<vmem>>, vector<1x128x128xf32>
    %8 = vector.shape_cast %7 : vector<1x128x128xf32> to vector<128x128xf32>
    %cst_10 = arith.constant dense<0.000000e+00> : vector<16x128xf32>
    %9 = tpu.matmul %6, %8, %cst_10 {dimension_numbers = #tpu.dot_dimension_numbers<[1], [0], [0], [1], [0, 0, 1, 1], [], []>} : vector<16x128xf32>, vector<128x128xf32>, vector<16x128xf32> -> vector<16x128xf32>
    %10 = arith.addf %5, %9 : vector<16x128xf32>
    %c1 = arith.constant 1 : index
    %c0_11 = arith.constant 0 : index
    %11 = vector.load %arg5[%c1, %c0_11] : memref<18x128xf32, #tpu.memory_space<vmem>>, vector<16x128xf32>
    %c1_12 = arith.constant 1 : index
    %c0_13 = arith.constant 0 : index
    %c0_14 = arith.constant 0 : index
    %12 = vector.load %arg2[%c1_12, %c0_13, %c0_14] : memref<3x128x128xf32, #tpu.memory_space<vmem>>, vector<1x128x128xf32>
    %13 = vector.shape_cast %12 : vector<1x128x128xf32> to vector<128x128xf32>
    %cst_15 = arith.constant dense<0.000000e+00> : vector<16x128xf32>
    %14 = tpu.matmul %11, %13, %cst_15 {dimension_numbers = #tpu.dot_dimension_numbers<[1], [0], [0], [1], [0, 0, 1, 1], [], []>} : vector<16x128xf32>, vector<128x128xf32>, vector<16x128xf32> -> vector<16x128xf32>
    %15 = arith.addf %10, %14 : vector<16x128xf32>
    %c2 = arith.constant 2 : index
    %c0_16 = arith.constant 0 : index
    %16 = vector.load %arg5[%c2, %c0_16] : memref<18x128xf32, #tpu.memory_space<vmem>>, vector<16x128xf32>
    %c2_17 = arith.constant 2 : index
    %c0_18 = arith.constant 0 : index
    %c0_19 = arith.constant 0 : index
    %17 = vector.load %arg2[%c2_17, %c0_18, %c0_19] : memref<3x128x128xf32, #tpu.memory_space<vmem>>, vector<1x128x128xf32>
    %18 = vector.shape_cast %17 : vector<1x128x128xf32> to vector<128x128xf32>
    %cst_20 = arith.constant dense<0.000000e+00> : vector<16x128xf32>
    %19 = tpu.matmul %16, %18, %cst_20 {dimension_numbers = #tpu.dot_dimension_numbers<[1], [0], [0], [1], [0, 0, 1, 1], [], []>} : vector<16x128xf32>, vector<128x128xf32>, vector<16x128xf32> -> vector<16x128xf32>
    %20 = arith.addf %15, %19 : vector<16x128xf32>
    %cst_21 = arith.constant 0.000000e+00 : f32
    %21 = vector.broadcast %cst_21 : f32 to vector<1x128xf32>
    %c0_22 = arith.constant 0 : index
    %c0_23 = arith.constant 0 : index
    %22 = vector.load %arg6[%c0_22, %c0_23] : memref<18x128xf32, #tpu.memory_space<vmem>>, vector<1x128xf32>
    tpu.vector_store %arg6[%c0_22, %c0_23], %21 {strides = array<i32>} : memref<18x128xf32, #tpu.memory_space<vmem>>, vector<1x128xf32>,
    %cst_24 = arith.constant 0.000000e+00 : f32
    %23 = vector.broadcast %cst_24 : f32 to vector<1x128xf32>
    %c17 = arith.constant 17 : index
    %c0_25 = arith.constant 0 : index
    %24 = vector.load %arg6[%c17, %c0_25] : memref<18x128xf32, #tpu.memory_space<vmem>>, vector<1x128xf32>
    tpu.vector_store %arg6[%c17, %c0_25], %23 {strides = array<i32>} : memref<18x128xf32, #tpu.memory_space<vmem>>, vector<1x128xf32>,
    %cst_26 = arith.constant 0.000000e+00 : f32
    %25 = vector.broadcast %cst_26 : f32 to vector<16x128xf32>
    %26 = arith.maximumf %20, %25 : vector<16x128xf32>
    %c1_27 = arith.constant 1 : index
    %c0_28 = arith.constant 0 : index
    %27 = vector.load %arg6[%c1_27, %c0_28] : memref<18x128xf32, #tpu.memory_space<vmem>>, vector<16x128xf32>
    tpu.vector_store %arg6[%c1_27, %c0_28], %26 {strides = array<i32>} : memref<18x128xf32, #tpu.memory_space<vmem>>, vector<16x128xf32>,
    %cst_29 = arith.constant 0.000000e+00 : f32
    %28 = vector.broadcast %cst_29 : f32 to vector<16x128xf32>
    %c0_30 = arith.constant 0 : index
    %c0_31 = arith.constant 0 : index
    %29 = vector.load %arg6[%c0_30, %c0_31] : memref<18x128xf32, #tpu.memory_space<vmem>>, vector<16x128xf32>
    %c0_32 = arith.constant 0 : index
    %c0_33 = arith.constant 0 : index
    %c0_34 = arith.constant 0 : index
    %30 = vector.load %arg3[%c0_32, %c0_33, %c0_34] : memref<3x128x128xf32, #tpu.memory_space<vmem>>, vector<1x128x128xf32>
    %31 = vector.shape_cast %30 : vector<1x128x128xf32> to vector<128x128xf32>
    %cst_35 = arith.constant dense<0.000000e+00> : vector<16x128xf32>
    %32 = tpu.matmul %29, %31, %cst_35 {dimension_numbers = #tpu.dot_dimension_numbers<[1], [0], [0], [1], [0, 0, 1, 1], [], []>} : vector<16x128xf32>, vector<128x128xf32>, vector<16x128xf32> -> vector<16x128xf32>
    %33 = arith.addf %28, %32 : vector<16x128xf32>
    %c1_36 = arith.constant 1 : index
    %c0_37 = arith.constant 0 : index
    %34 = vector.load %arg6[%c1_36, %c0_37] : memref<18x128xf32, #tpu.memory_space<vmem>>, vector<16x128xf32>
    %c1_38 = arith.constant 1 : index
    %c0_39 = arith.constant 0 : index
    %c0_40 = arith.constant 0 : index
    %35 = vector.load %arg3[%c1_38, %c0_39, %c0_40] : memref<3x128x128xf32, #tpu.memory_space<vmem>>, vector<1x128x128xf32>
    %36 = vector.shape_cast %35 : vector<1x128x128xf32> to vector<128x128xf32>
    %cst_41 = arith.constant dense<0.000000e+00> : vector<16x128xf32>
    %37 = tpu.matmul %34, %36, %cst_41 {dimension_numbers = #tpu.dot_dimension_numbers<[1], [0], [0], [1], [0, 0, 1, 1], [], []>} : vector<16x128xf32>, vector<128x128xf32>, vector<16x128xf32> -> vector<16x128xf32>
    %38 = arith.addf %33, %37 : vector<16x128xf32>
    %c2_42 = arith.constant 2 : index
    %c0_43 = arith.constant 0 : index
    %39 = vector.load %arg6[%c2_42, %c0_43] : memref<18x128xf32, #tpu.memory_space<vmem>>, vector<16x128xf32>
    %c2_44 = arith.constant 2 : index
    %c0_45 = arith.constant 0 : index
    %c0_46 = arith.constant 0 : index
    %40 = vector.load %arg3[%c2_44, %c0_45, %c0_46] : memref<3x128x128xf32, #tpu.memory_space<vmem>>, vector<1x128x128xf32>
    %41 = vector.shape_cast %40 : vector<1x128x128xf32> to vector<128x128xf32>
    %cst_47 = arith.constant dense<0.000000e+00> : vector<16x128xf32>
    %42 = tpu.matmul %39, %41, %cst_47 {dimension_numbers = #tpu.dot_dimension_numbers<[1], [0], [0], [1], [0, 0, 1, 1], [], []>} : vector<16x128xf32>, vector<128x128xf32>, vector<16x128xf32> -> vector<16x128xf32>
    %43 = arith.addf %38, %42 : vector<16x128xf32>
    %c0_48 = arith.constant 0 : index
    %c1_49 = arith.constant 1 : index
    %c0_50 = arith.constant 0 : index
    %44 = vector.load %arg1[%c0_48, %c1_49, %c0_50] : memref<1x18x128xf32, #tpu.memory_space<vmem>>, vector<1x16x128xf32>
    %45 = vector.shape_cast %44 : vector<1x16x128xf32> to vector<16x128xf32>
    %46 = arith.addf %45, %43 : vector<16x128xf32>
    %cst_51 = arith.constant 0.707106769 : f32
    %47 = vector.broadcast %cst_51 : f32 to vector<16x128xf32>
    %48 = arith.mulf %46, %47 : vector<16x128xf32>
    %c0_52 = arith.constant 0 : index
    %c0_53 = arith.constant 0 : index
    %c0_54 = arith.constant 0 : index
    %49 = vector.load %arg4[%c0_52, %c0_53, %c0_54] : memref<1x16x128xf32, #tpu.memory_space<vmem>>, vector<1x16x128xf32>
    %50 = vector.shape_cast %49 : vector<1x16x128xf32> to vector<16x128xf32>
    %51 = vector.shape_cast %48 : vector<16x128xf32> to vector<1x16x128xf32>
    tpu.vector_store %arg4[%c0_52, %c0_53, %c0_54], %51 {strides = array<i32>} : memref<1x16x128xf32, #tpu.memory_space<vmem>>, vector<1x16x128xf32>,
    return
  }
  func.func @transform_0(%arg0: i32) -> (i32, i32, i32) {
    %c0_i32 = arith.constant 0 : i32
    %c0_i32_0 = arith.constant 0 : i32
    %c0_i32_1 = arith.constant 0 : i32
    return %arg0, %c0_i32, %c0_i32_0 : i32, i32, i32
  }
  func.func @transform_1(%arg0: i32) -> (i32, i32, i32) {
    %c0_i32 = arith.constant 0 : i32
    %c0_i32_0 = arith.constant 0 : i32
    %c0_i32_1 = arith.constant 0 : i32
    %c0_i32_2 = arith.constant 0 : i32
    return %c0_i32, %c0_i32_0, %c0_i32_1 : i32, i32, i32
  }
  func.func @transform_2(%arg0: i32) -> (i32, i32, i32) {
    %c0_i32 = arith.constant 0 : i32
    %c0_i32_0 = arith.constant 0 : i32
    %c0_i32_1 = arith.constant 0 : i32
    %c0_i32_2 = arith.constant 0 : i32
    return %c0_i32, %c0_i32_0, %c0_i32_1 : i32, i32, i32
  }
  func.func @transform_3(%arg0: i32) -> (i32, i32, i32) {
    %c0_i32 = arith.constant 0 : i32
    %c0_i32_0 = arith.constant 0 : i32
    %c0_i32_1 = arith.constant 0 : i32
    return %arg0, %c0_i32, %c0_i32_0 : i32, i32, i32
  }
}

</mosaic_0001>

<llo_original>
// kernel: tpu_custom_call.1
$region0: #{tpu_custom_call.1}
  #allocation0 [shape = 'u32[]', space=smem, size = 0x4, offset = 0x4, fixed_abs, tag = 'smem constant byte address 0x4 - core index']
  #allocation1 [shape = 'u32[72,128]{1,0:T(1,128)}', space=vmem, size = 0x9000, scoped, tag = 'internal scratch']
  #allocation2 [shape = 'f32[18,128]{1,0:T(8,128)}', space=vmem, size = 0x3000, scoped, tag = 'scratch operand']
  #allocation3 [shape = 'f32[18,128]{1,0:T(8,128)}', space=vmem, size = 0x3000, scoped, tag = 'scratch operand']
  %s0 = inlined_call_operand.vmem [shape: f32[2,18,128], index: 0, kind: input, shape index: {}]
  %s1 = inlined_call_operand.hbm [shape: f32[3,128,128], index: 1, kind: input, shape index: {}]
  %s2 = inlined_call_operand.hbm [shape: f32[3,128,128], index: 2, kind: input, shape index: {}]
  %s3 = inlined_call_operand.hbm [shape: f32[2,16,128], index: 3, kind: output, shape index: {}]
  %s4 = sld [smem:[#allocation0]]
  $region53: #{tpu_custom_call.1} parent=0
    _
  %s6 = ssub.s32 1, %s4
  %s7 = scalar_select 0, %s6, %s4
  $region1: #{tpu_custom_call.1} parent=0
    #allocation4 [shape = 'u8[196608]{0}', space=vmem, size = 0x30000, scoped, tag = 'input window, operand 1, single buffered']
    #allocation5 [shape = 's32[2]{0}', space=sflag, size = 0x8, scoped, tag = 'scoped memory for tpu_custom_call.1']
    #allocation6 [shape = 's32[2]{0}', space=sflag, size = 0x8, scoped, tag = 'scoped memory for tpu_custom_call.1']
    #allocation7 [shape = 'u8[196608]{0}', space=vmem, size = 0x30000, scoped, tag = 'input window, operand 2, single buffered']
    #allocation8 [shape = 's32[1]{0}', space=sflag, size = 0x4, scoped, tag = 'scoped memory for tpu_custom_call.1']
    #allocation9 [shape = 'u8[16384]{0}', space=vmem, size = 0x4000, scoped, tag = 'output window, operand 0']
    %8 = vsyncpa [#allocation5], 0
    %9 = vsyncpa [#allocation8], 0
    %10 = vsyncpa [#allocation6], 0
    %s11 = scalar_lea.sflag [#allocation6], 1
    %12 = vsyncpa %s11, 0
    loop: start=0, step=1, limit=4
    $region2: #{tpu_custom_call.1} parent=1 // loop_pre_header
      _
    $region3: #{tpu_custom_call.1} parent=1 // loop_header
      %s14 = sphi 0, %s18
      %p15 = scmp.ge.s32.totalorder %s14, 4
      %s24 = sphi 0, %s26
      %s27 = sphi 0, %s24
      %s28 = sphi 0, %s27
      %s44 = sphi 0, %s28
      %s48 = sphi 0, %s48
      %s50 = sphi 0, %s48
      %s51 = sphi 0, %s50
      %s65 = sphi 0, %s51
      %s69 = sphi 0, %s69
      %s71 = sphi 0, %s69
      %s72 = sphi 0, %s71
      %s86 = sphi 0, %s72
      %s92 = sphi 0, %s94
      %s95 = sphi 0, %s92
      %s96 = sphi 0, %s95
      %s112 = sphi 0, %s96
    $region4: #{tpu_custom_call.1} parent=1 // loop_header_branch
      %17 = sbr.rel (%p15) target = $region8
    $region5: #{tpu_custom_call.1} parent=1 // loop_body
      %s19 = ssub.s32 %s14, 1
      %s20 = ssub.s32 %s14, 2
      %s21 = sadd.s32 %s14, 1
      %s22 = ssub.s32 %s14, %s21
      %p23 = scmp.eq.s32.totalorder %s22, 0
      %s25 = sadd.s32 %s24, 1
      %s26 = scalar_select %p23, %s24, %s25
      %p29 = pneg %p23
      %p30 = scmp.eq.s32.totalorder %s14, 1
      %p31 = por %p29, %p30
      %p32 = scmp.ne.s32.totalorder %s24, %s27
      %p33 = scmp.eq.s32.totalorder %s14, 0
      %p34 = por %p32, %p33
      %p35 = scmp.ne.s32.totalorder %s24, %s27
      %p36 = scmp.eq.s32.totalorder %s19, 1
      %p37 = por %p35, %p36
      %p38 = scmp.ne.s32.totalorder %s27, %s28
      %p39 = scmp.eq.s32.totalorder %s19, 0
      %p40 = por %p38, %p39
      %p41 = scmp.ne.s32.totalorder %s27, %s28
      %p42 = scmp.eq.s32.totalorder %s20, 1
      %p43 = por %p41, %p42
      %p45 = scmp.ne.s32.totalorder %s28, %s44
      %p46 = scmp.eq.s32.totalorder %s20, 0
      %p47 = por %p45, %p46
      %s49 = sadd.s32 %s48, 1
      %p52 = scmp.eq.s32.totalorder %s14, 1
      %p53 = scmp.ne.s32.totalorder %s48, %s50
      %p54 = scmp.eq.s32.totalorder %s14, 0
      %p55 = por %p53, %p54
      %p56 = scmp.ne.s32.totalorder %s48, %s50
      %p57 = scmp.eq.s32.totalorder %s19, 1
      %p58 = por %p56, %p57
      %p59 = scmp.ne.s32.totalorder %s50, %s51
      %p60 = scmp.eq.s32.totalorder %s19, 0
      %p61 = por %p59, %p60
      %p62 = scmp.ne.s32.totalorder %s50, %s51
      %p63 = scmp.eq.s32.totalorder %s20, 1
      %p64 = por %p62, %p63
      %p66 = scmp.ne.s32.totalorder %s51, %s65
      %p67 = scmp.eq.s32.totalorder %s20, 0
      %p68 = por %p66, %p67
      %s70 = sadd.s32 %s69, 1
      %p73 = scmp.eq.s32.totalorder %s14, 1
      %p74 = scmp.ne.s32.totalorder %s69, %s71
      %p75 = scmp.eq.s32.totalorder %s14, 0
      %p76 = por %p74, %p75
      %p77 = scmp.ne.s32.totalorder %s69, %s71
      %p78 = scmp.eq.s32.totalorder %s19, 1
      %p79 = por %p77, %p78
      %p80 = scmp.ne.s32.totalorder %s71, %s72
      %p81 = scmp.eq.s32.totalorder %s19, 0
      %p82 = por %p80, %p81
      %p83 = scmp.ne.s32.totalorder %s71, %s72
      %p84 = scmp.eq.s32.totalorder %s20, 1
      %p85 = por %p83, %p84
      %p87 = scmp.ne.s32.totalorder %s72, %s86
      %p88 = scmp.eq.s32.totalorder %s20, 0
      %p89 = por %p87, %p88
      %s90 = ssub.s32 %s14, %s21
      %p91 = scmp.eq.s32.totalorder %s90, 0
      %s93 = sadd.s32 %s92, 1
      %s94 = scalar_select %p91, %s92, %s93
      %p97 = pneg %p91
      %p98 = scmp.eq.s32.totalorder %s14, 1
      %p99 = por %p97, %p98
      %p100 = scmp.ne.s32.totalorder %s92, %s95
      %p101 = scmp.eq.s32.totalorder %s14, 0
      %p102 = por %p100, %p101
      %p103 = scmp.ne.s32.totalorder %s92, %s95
      %p104 = scmp.eq.s32.totalorder %s19, 1
      %p105 = por %p103, %p104
      %p106 = scmp.ne.s32.totalorder %s95, %s96
      %p107 = scmp.eq.s32.totalorder %s19, 0
      %p108 = por %p106, %p107
      %p109 = scmp.ne.s32.totalorder %s95, %s96
      %p110 = scmp.eq.s32.totalorder %s20, 1
      %p111 = por %p109, %p110
      %p113 = scmp.ne.s32.totalorder %s96, %s112
      %p114 = scmp.eq.s32.totalorder %s20, 0
      %p115 = por %p113, %p114
      %p116 = scmp.le.s32.totalorder 1, %s14
      %p117 = scmp.lt.s32.totalorder %s14, 3
      %p118 = pnand %p116, %p117
      %p119 = pneg %p118
      // Predicated region
      $region9: #{tpu_custom_call.1} parent=5 // pred_check
        _
      $region10: #{tpu_custom_call.1} parent=5 // pred_check_branch
        %121 = sbr.rel (%p118) target = $region12
      $region11: #{tpu_custom_call.1} parent=5 // pred_region
        %s122 = ssub.s32 %s14, 1
        // Predicated region
        $region13: #{tpu_custom_call.1} parent=11 // pred_check
          %p123 = pneg %p61
        $region14: #{tpu_custom_call.1} parent=11 // pred_check_branch
          %125 = sbr.rel (%p123) target = $region16
        $region15: #{tpu_custom_call.1} parent=11 // pred_region
          %127 = vsyncadd [#allocation5], 0
          %s128 = sshll.u32 %s1, 4
          %s129 = int_to_ptr.hbm [resolvable:$true] %s128
          %s130 = sshll.u32 [#allocation4], 4
          %s131 = int_to_ptr.vmem [resolvable:$true] %s130
          %136 = dma.hbm_to_vmem [thread:$0]  %s129, 6144, %s131, [#allocation5], 128, 128, 8
        $region16: #{tpu_custom_call.1} parent=11 // pred_fallthru
          _
        // Predicated region
        $region17: #{tpu_custom_call.1} parent=11 // pred_check
          %p137 = pneg %p82
        $region18: #{tpu_custom_call.1} parent=11 // pred_check_branch
          %139 = sbr.rel (%p137) target = $region20
        $region19: #{tpu_custom_call.1} parent=11 // pred_region
          %141 = vsyncadd [#allocation8], 0
          %s142 = sshll.u32 %s2, 4
          %s143 = int_to_ptr.hbm [resolvable:$true] %s142
          %s144 = sshll.u32 [#allocation7], 4
          %s145 = int_to_ptr.vmem [resolvable:$true] %s144
          %150 = dma.hbm_to_vmem [thread:$0]  %s143, 6144, %s145, [#allocation8], 128, 128, 8
        $region20: #{tpu_custom_call.1} parent=11 // pred_fallthru
          _
      $region12: #{tpu_custom_call.1} parent=5 // pred_fallthru
        _
      %p151 = scmp.lt.s32.totalorder %s14, 2
      // Predicated region
      $region21: #{tpu_custom_call.1} parent=5 // pred_check
        %p152 = pneg %p151
      $region22: #{tpu_custom_call.1} parent=5 // pred_check_branch
        %154 = sbr.rel (%p152) target = $region24
      $region23: #{tpu_custom_call.1} parent=5 // pred_region
        // Predicated region
        $region25: #{tpu_custom_call.1} parent=23 // pred_check
          %p155 = pneg %p34
        $region26: #{tpu_custom_call.1} parent=23 // pred_check_branch
          %157 = sbr.rel (%p155) target = $region28
        $region27: #{tpu_custom_call.1} parent=23 // pred_region
          %p158 = scmp.lt.s32.totalorder %s14, 1
          %s159 = scalar_select %p158, %s14, 1
          %s160 = smul.addr %s159, 3
          %s161 = smul.addr %s160, 8
          %s162 = scalar_lea.vmem %s0, %s161
        $region28: #{tpu_custom_call.1} parent=23 // pred_fallthru
          _
      $region24: #{tpu_custom_call.1} parent=5 // pred_fallthru
        _
      %p163 = scmp.le.s32.totalorder 1, %s14
      %p164 = scmp.lt.s32.totalorder %s14, 3
      %p165 = pnand %p163, %p164
      %p166 = pneg %p165
      // Predicated region
      $region29: #{tpu_custom_call.1} parent=5 // pred_check
        _
      $region30: #{tpu_custom_call.1} parent=5 // pred_check_branch
        %168 = sbr.rel (%p165) target = $region32
      $region31: #{tpu_custom_call.1} parent=5 // pred_region
        %s169 = ssub.s32 %s14, 1
        // Predicated region
        $region33: #{tpu_custom_call.1} parent=31 // pred_check
          %p170 = pneg %p61
        $region34: #{tpu_custom_call.1} parent=31 // pred_check_branch
          %172 = sbr.rel (%p170) target = $region36
        $region35: #{tpu_custom_call.1} parent=31 // pred_region
          %174 = dma.done [#allocation5], 6144
        $region36: #{tpu_custom_call.1} parent=31 // pred_fallthru
          _
        // Predicated region
        $region37: #{tpu_custom_call.1} parent=31 // pred_check
          %p175 = pneg %p82
        $region38: #{tpu_custom_call.1} parent=31 // pred_check_branch
          %177 = sbr.rel (%p175) target = $region40
        $region39: #{tpu_custom_call.1} parent=31 // pred_region
          %179 = dma.done [#allocation8], 6144
        $region40: #{tpu_custom_call.1} parent=31 // pred_fallthru
          _
        %p180 = scmp.lt.s32.totalorder %s19, 1
        %s181 = scalar_select %p180, %s19, 1
        %s182 = smul.addr %s181, 3
        %s183 = smul.addr %s182, 8
        %s184 = scalar_lea.vmem %s0, %s183
        %p185 = pneg %p40
        %p186 = pneg %p37
        %p187 = pneg %p61
        %p188 = pneg %p58
        %p189 = pneg %p82
        %p190 = pneg %p79
        %p191 = pneg %p108
        %p192 = pneg %p105
        %s193 = sand.u32 %s95, 1
        %s194 = scalar_lea.sflag [#allocation6], %s193
        %s195 = sand.u32 %s95, 1
        %s196 = smul.addr %s195, 16
        %s197 = scalar_lea.vmem [#allocation9], %s196
        %p198 = scmp.lt.s32.totalorder %s19, 1
        %s199 = scalar_select %p198, %s19, 1
        %s200 = smul.addr %s199, 3
        %s201 = smul.addr %s200, 8
        %s202 = scalar_lea.vmem %s0, %s201
        %v203 = vld [vmem:[%s202] sm:$0xff]
        %v204 = vld [vmem:[%s202 + $0x8] sm:$0xff]
        %v205 = vld [vmem:[%s202 + $0x10] sm:$0x3]
        %v206 = vmax.f32 %v203, 0.0
        %v207 = vmax.f32 %v204, 0.0
        %v208 = vmax.f32 %v205, 0.0
        %209 = vst [vmem:[#allocation2] sm:$0xff] %v206
        %210 = vst [vmem:[#allocation2 + $0x8] sm:$0xff] %v207
        %211 = vst [vmem:[#allocation2 + $0x10] sm:$0x3] %v208
        %v212 = vld [vmem:[#allocation2] sm:$0xff]
        %v213 = vld [vmem:[#allocation2 + $0x8] sm:$0xff]
        %v214 = vld [vmem:[#allocation4] sm:$0xff]
        %v215 = vld [vmem:[#allocation4 + $0x8] sm:$0xff]
        %v216 = vld [vmem:[#allocation4 + $0x10] sm:$0xff]
        %v217 = vld [vmem:[#allocation4 + $0x18] sm:$0xff]
        %v218 = vld [vmem:[#allocation4 + $0x20] sm:$0xff]
        %v219 = vld [vmem:[#allocation4 + $0x28] sm:$0xff]
        %v220 = vld [vmem:[#allocation4 + $0x30] sm:$0xff]
        %v221 = vld [vmem:[#allocation4 + $0x38] sm:$0xff]
        %v222 = vld [vmem:[#allocation4 + $0x40] sm:$0xff]
        %v223 = vld [vmem:[#allocation4 + $0x48] sm:$0xff]
        %v224 = vld [vmem:[#allocation4 + $0x50] sm:$0xff]
        %v225 = vld [vmem:[#allocation4 + $0x58] sm:$0xff]
        %v226 = vld [vmem:[#allocation4 + $0x60] sm:$0xff]
        %v227 = vld [vmem:[#allocation4 + $0x68] sm:$0xff]
        %v228 = vld [vmem:[#allocation4 + $0x70] sm:$0xff]
        %v229 = vld [vmem:[#allocation4 + $0x78] sm:$0xff]
        %v230 = vld [vmem:[#allocation2 + $0x1] sm:$0xff]
        %v231 = vld [vmem:[#allocation2 + $0x9] sm:$0xff]
        %s232 = scalar_lea.vmem [#allocation4], 128
        %v233 = vld [vmem:[%s232] sm:$0xff]
        %v234 = vld [vmem:[%s232 + $0x8] sm:$0xff]
        %v235 = vld [vmem:[%s232 + $0x10] sm:$0xff]
        %v236 = vld [vmem:[%s232 + $0x18] sm:$0xff]
        %v237 = vld [vmem:[%s232 + $0x20] sm:$0xff]
        %v238 = vld [vmem:[%s232 + $0x28] sm:$0xff]
        %v239 = vld [vmem:[%s232 + $0x30] sm:$0xff]
        %v240 = vld [vmem:[%s232 + $0x38] sm:$0xff]
        %v241 = vld [vmem:[%s232 + $0x40] sm:$0xff]
        %v242 = vld [vmem:[%s232 + $0x48] sm:$0xff]
        %v243 = vld [vmem:[%s232 + $0x50] sm:$0xff]
        %v244 = vld [vmem:[%s232 + $0x58] sm:$0xff]
        %v245 = vld [vmem:[%s232 + $0x60] sm:$0xff]
        %v246 = vld [vmem:[%s232 + $0x68] sm:$0xff]
        %v247 = vld [vmem:[%s232 + $0x70] sm:$0xff]
        %v248 = vld [vmem:[%s232 + $0x78] sm:$0xff]
        %249 = vmatpush.msra.mxu0 %v248
        %250 = vmatpush.msra.mxu0 %v247
        %251 = vmatpush.msra.mxu0 %v246
        %252 = vmatpush.msra.mxu0 %v245
        %253 = vmatpush.msra.mxu0 %v244
        %254 = vmatpush.msra.mxu0 %v243
        %255 = vmatpush.msra.mxu0 %v242
        %256 = vmatpush.msra.mxu0 %v241
        %257 = vmatpush.msra.mxu0 %v240
        %258 = vmatpush.msra.mxu0 %v239
        %259 = vmatpush.msra.mxu0 %v238
        %260 = vmatpush.msra.mxu0 %v237
        %261 = vmatpush.msra.mxu0 %v236
        %262 = vmatpush.msra.mxu0 %v235
        %263 = vmatpush.msra.mxu0 %v234
        %264 = vmatpush.msra.mxu0 %v233
        %265 = vmatmul.f32.gmra.mxu0 %v230
        %v266 = vpop.f32.mrf.mxu0
        %v267 = vadd.f32 0.0, %v266
        %268 = vmatmul.f32.gmra.mxu0 %v231
        %v269 = vpop.f32.mrf.mxu0
        %v270 = vadd.f32 0.0, %v269
        %271 = vdwg.mxu0
        %272 = vmatpush.msra.mxu0 %v229
        %273 = vmatpush.msra.mxu0 %v228
        %274 = vmatpush.msra.mxu0 %v227
        %275 = vmatpush.msra.mxu0 %v226
        %276 = vmatpush.msra.mxu0 %v225
        %277 = vmatpush.msra.mxu0 %v224
        %278 = vmatpush.msra.mxu0 %v223
        %279 = vmatpush.msra.mxu0 %v222
        %280 = vmatpush.msra.mxu0 %v221
        %281 = vmatpush.msra.mxu0 %v220
        %282 = vmatpush.msra.mxu0 %v219
        %283 = vmatpush.msra.mxu0 %v218
        %284 = vmatpush.msra.mxu0 %v217
        %285 = vmatpush.msra.mxu0 %v216
        %286 = vmatpush.msra.mxu0 %v215
        %287 = vmatpush.msra.mxu0 %v214
        %288 = vmatmul.f32.gmra.mxu0 %v212
        %v289 = vpop.f32.mrf.mxu0
        %v290 = vadd.f32 %v267, %v289
        %291 = vmatmul.f32.gmra.mxu0 %v213
        %v292 = vpop.f32.mrf.mxu0
        %v293 = vadd.f32 %v270, %v292
        %294 = vdwg.mxu0
        %v295 = vld [vmem:[#allocation2 + $0x2] sm:$0xff]
        %v296 = vld [vmem:[#allocation2 + $0xa] sm:$0xff]
        %s297 = scalar_lea.vmem [#allocation4], 256
        %v298 = vld [vmem:[%s297] sm:$0xff]
        %v299 = vld [vmem:[%s297 + $0x8] sm:$0xff]
        %v300 = vld [vmem:[%s297 + $0x10] sm:$0xff]
        %v301 = vld [vmem:[%s297 + $0x18] sm:$0xff]
        %v302 = vld [vmem:[%s297 + $0x20] sm:$0xff]
        %v303 = vld [vmem:[%s297 + $0x28] sm:$0xff]
        %v304 = vld [vmem:[%s297 + $0x30] sm:$0xff]
        %v305 = vld [vmem:[%s297 + $0x38] sm:$0xff]
        %v306 = vld [vmem:[%s297 + $0x40] sm:$0xff]
        %v307 = vld [vmem:[%s297 + $0x48] sm:$0xff]
        %v308 = vld [vmem:[%s297 + $0x50] sm:$0xff]
        %v309 = vld [vmem:[%s297 + $0x58] sm:$0xff]
        %v310 = vld [vmem:[%s297 + $0x60] sm:$0xff]
        %v311 = vld [vmem:[%s297 + $0x68] sm:$0xff]
        %v312 = vld [vmem:[%s297 + $0x70] sm:$0xff]
        %v313 = vld [vmem:[%s297 + $0x78] sm:$0xff]
        %314 = vmatpush.msra.mxu0 %v313
        %315 = vmatpush.msra.mxu0 %v312
        %316 = vmatpush.msra.mxu0 %v311
        %317 = vmatpush.msra.mxu0 %v310
        %318 = vmatpush.msra.mxu0 %v309
        %319 = vmatpush.msra.mxu0 %v308
        %320 = vmatpush.msra.mxu0 %v307
        %321 = vmatpush.msra.mxu0 %v306
        %322 = vmatpush.msra.mxu0 %v305
        %323 = vmatpush.msra.mxu0 %v304
        %324 = vmatpush.msra.mxu0 %v303
        %325 = vmatpush.msra.mxu0 %v302
        %326 = vmatpush.msra.mxu0 %v301
        %327 = vmatpush.msra.mxu0 %v300
        %328 = vmatpush.msra.mxu0 %v299
        %329 = vmatpush.msra.mxu0 %v298
        %330 = vmatmul.f32.gmra.mxu0 %v295
        %v331 = vpop.f32.mrf.mxu0
        %v332 = vadd.f32 0.0, %v331
        %333 = vmatmul.f32.gmra.mxu0 %v296
        %v334 = vpop.f32.mrf.mxu0
        %v335 = vadd.f32 0.0, %v334
        %336 = vdwg.mxu0
        %v337 = vadd.f32 %v290, %v332
        %v338 = vadd.f32 %v293, %v335
        %339 = vst [vmem:[#allocation3] sm:$0x1] 0.0
        %340 = vst [vmem:[#allocation3 + $0x11] sm:$0x1] 0.0
        %v341 = vmax.f32 %v337, 0.0
        %v342 = vmax.f32 %v338, 0.0
        %343 = vst [vmem:[#allocation3 + $0x1] sm:$0xff] %v341
        %344 = vst [vmem:[#allocation3 + $0x9] sm:$0xff] %v342
        %v345 = vld [vmem:[#allocation3] sm:$0xff]
        %v346 = vld [vmem:[#allocation3 + $0x8] sm:$0xff]
        %v347 = vld [vmem:[#allocation7] sm:$0xff]
        %v348 = vld [vmem:[#allocation7 + $0x8] sm:$0xff]
        %v349 = vld [vmem:[#allocation7 + $0x10] sm:$0xff]
        %v350 = vld [vmem:[#allocation7 + $0x18] sm:$0xff]
        %v351 = vld [vmem:[#allocation7 + $0x20] sm:$0xff]
        %v352 = vld [vmem:[#allocation7 + $0x28] sm:$0xff]
        %v353 = vld [vmem:[#allocation7 + $0x30] sm:$0xff]
        %v354 = vld [vmem:[#allocation7 + $0x38] sm:$0xff]
        %v355 = vld [vmem:[#allocation7 + $0x40] sm:$0xff]
        %v356 = vld [vmem:[#allocation7 + $0x48] sm:$0xff]
        %v357 = vld [vmem:[#allocation7 + $0x50] sm:$0xff]
        %v358 = vld [vmem:[#allocation7 + $0x58] sm:$0xff]
        %v359 = vld [vmem:[#allocation7 + $0x60] sm:$0xff]
        %v360 = vld [vmem:[#allocation7 + $0x68] sm:$0xff]
        %v361 = vld [vmem:[#allocation7 + $0x70] sm:$0xff]
        %v362 = vld [vmem:[#allocation7 + $0x78] sm:$0xff]
        %v363 = vld [vmem:[#allocation3 + $0x1] sm:$0xff]
        %v364 = vld [vmem:[#allocation3 + $0x9] sm:$0xff]
        %s365 = scalar_lea.vmem [#allocation7], 128
        %v366 = vld [vmem:[%s365] sm:$0xff]
        %v367 = vld [vmem:[%s365 + $0x8] sm:$0xff]
        %v368 = vld [vmem:[%s365 + $0x10] sm:$0xff]
        %v369 = vld [vmem:[%s365 + $0x18] sm:$0xff]
        %v370 = vld [vmem:[%s365 + $0x20] sm:$0xff]
        %v371 = vld [vmem:[%s365 + $0x28] sm:$0xff]
        %v372 = vld [vmem:[%s365 + $0x30] sm:$0xff]
        %v373 = vld [vmem:[%s365 + $0x38] sm:$0xff]
        %v374 = vld [vmem:[%s365 + $0x40] sm:$0xff]
        %v375 = vld [vmem:[%s365 + $0x48] sm:$0xff]
        %v376 = vld [vmem:[%s365 + $0x50] sm:$0xff]
        %v377 = vld [vmem:[%s365 + $0x58] sm:$0xff]
        %v378 = vld [vmem:[%s365 + $0x60] sm:$0xff]
        %v379 = vld [vmem:[%s365 + $0x68] sm:$0xff]
        %v380 = vld [vmem:[%s365 + $0x70] sm:$0xff]
        %v381 = vld [vmem:[%s365 + $0x78] sm:$0xff]
        %382 = vmatpush.msra.mxu0 %v381
        %383 = vmatpush.msra.mxu0 %v380
        %384 = vmatpush.msra.mxu0 %v379
        %385 = vmatpush.msra.mxu0 %v378
        %386 = vmatpush.msra.mxu0 %v377
        %387 = vmatpush.msra.mxu0 %v376
        %388 = vmatpush.msra.mxu0 %v375
        %389 = vmatpush.msra.mxu0 %v374
        %390 = vmatpush.msra.mxu0 %v373
        %391 = vmatpush.msra.mxu0 %v372
        %392 = vmatpush.msra.mxu0 %v371
        %393 = vmatpush.msra.mxu0 %v370
        %394 = vmatpush.msra.mxu0 %v369
        %395 = vmatpush.msra.mxu0 %v368
        %396 = vmatpush.msra.mxu0 %v367
        %397 = vmatpush.msra.mxu0 %v366
        %398 = vmatmul.f32.gmra.mxu0 %v363
        %v399 = vpop.f32.mrf.mxu0
        %v400 = vadd.f32 0.0, %v399
        %401 = vmatmul.f32.gmra.mxu0 %v364
        %v402 = vpop.f32.mrf.mxu0
        %v403 = vadd.f32 0.0, %v402
        %404 = vdwg.mxu0
        %405 = vmatpush.msra.mxu0 %v362
        %406 = vmatpush.msra.mxu0 %v361
        %407 = vmatpush.msra.mxu0 %v360
        %408 = vmatpush.msra.mxu0 %v359
        %409 = vmatpush.msra.mxu0 %v358
        %410 = vmatpush.msra.mxu0 %v357
        %411 = vmatpush.msra.mxu0 %v356
        %412 = vmatpush.msra.mxu0 %v355
        %413 = vmatpush.msra.mxu0 %v354
        %414 = vmatpush.msra.mxu0 %v353
        %415 = vmatpush.msra.mxu0 %v352
        %416 = vmatpush.msra.mxu0 %v351
        %417 = vmatpush.msra.mxu0 %v350
        %418 = vmatpush.msra.mxu0 %v349
        %419 = vmatpush.msra.mxu0 %v348
        %420 = vmatpush.msra.mxu0 %v347
        %421 = vmatmul.f32.gmra.mxu0 %v345
        %v422 = vpop.f32.mrf.mxu0
        %v423 = vadd.f32 %v400, %v422
        %424 = vmatmul.f32.gmra.mxu0 %v346
        %v425 = vpop.f32.mrf.mxu0
        %v426 = vadd.f32 %v403, %v425
        %427 = vdwg.mxu0
        %v428 = vld [vmem:[#allocation3 + $0x2] sm:$0xff]
        %v429 = vld [vmem:[#allocation3 + $0xa] sm:$0xff]
        %s430 = scalar_lea.vmem [#allocation7], 256
        %v431 = vld [vmem:[%s430] sm:$0xff]
        %v432 = vld [vmem:[%s430 + $0x8] sm:$0xff]
        %v433 = vld [vmem:[%s430 + $0x10] sm:$0xff]
        %v434 = vld [vmem:[%s430 + $0x18] sm:$0xff]
        %v435 = vld [vmem:[%s430 + $0x20] sm:$0xff]
        %v436 = vld [vmem:[%s430 + $0x28] sm:$0xff]
        %v437 = vld [vmem:[%s430 + $0x30] sm:$0xff]
        %v438 = vld [vmem:[%s430 + $0x38] sm:$0xff]
        %v439 = vld [vmem:[%s430 + $0x40] sm:$0xff]
        %v440 = vld [vmem:[%s430 + $0x48] sm:$0xff]
        %v441 = vld [vmem:[%s430 + $0x50] sm:$0xff]
        %v442 = vld [vmem:[%s430 + $0x58] sm:$0xff]
        %v443 = vld [vmem:[%s430 + $0x60] sm:$0xff]
        %v444 = vld [vmem:[%s430 + $0x68] sm:$0xff]
        %v445 = vld [vmem:[%s430 + $0x70] sm:$0xff]
        %v446 = vld [vmem:[%s430 + $0x78] sm:$0xff]
        %447 = vmatpush.msra.mxu0 %v446
        %448 = vmatpush.msra.mxu0 %v445
        %449 = vmatpush.msra.mxu0 %v444
        %450 = vmatpush.msra.mxu0 %v443
        %451 = vmatpush.msra.mxu0 %v442
        %452 = vmatpush.msra.mxu0 %v441
        %453 = vmatpush.msra.mxu0 %v440
        %454 = vmatpush.msra.mxu0 %v439
        %455 = vmatpush.msra.mxu0 %v438
        %456 = vmatpush.msra.mxu0 %v437
        %457 = vmatpush.msra.mxu0 %v436
        %458 = vmatpush.msra.mxu0 %v435
        %459 = vmatpush.msra.mxu0 %v434
        %460 = vmatpush.msra.mxu0 %v433
        %461 = vmatpush.msra.mxu0 %v432
        %462 = vmatpush.msra.mxu0 %v431
        %463 = vmatmul.f32.gmra.mxu0 %v428
        %v464 = vpop.f32.mrf.mxu0
        %v465 = vadd.f32 0.0, %v464
        %466 = vmatmul.f32.gmra.mxu0 %v429
        %v467 = vpop.f32.mrf.mxu0
        %v468 = vadd.f32 0.0, %v467
        %469 = vdwg.mxu0
        %v470 = vadd.f32 %v423, %v465
        %v471 = vadd.f32 %v426, %v468
        %v472 = vld [vmem:[%s202 + $0x1] sm:$0xff]
        %v473 = vld [vmem:[%s202 + $0x9] sm:$0xff]
        %v474 = vadd.f32 %v472, %v470
        %v475 = vadd.f32 %v473, %v471
        %v476 = vmul.f32 %v474, 0.70710677
        %v477 = vmul.f32 %v475, 0.70710677
        %478 = vst [vmem:[%s197] sm:$0xff] %v476
        %479 = vst [vmem:[%s197 + $0x8] sm:$0xff] %v477
        %s480 = sand.u32 %s95, 1
        %s481 = scalar_lea.sflag [#allocation6], %s480
        %s482 = sand.u32 %s95, 1
        %s483 = smul.addr %s482, 16
        %s484 = scalar_lea.vmem [#allocation9], %s483
        // Predicated region
        $region41: #{tpu_custom_call.1} parent=31 // pred_check
          %p485 = pneg %p105
        $region42: #{tpu_custom_call.1} parent=31 // pred_check_branch
          %487 = sbr.rel (%p485) target = $region44
        $region43: #{tpu_custom_call.1} parent=31 // pred_region
          %489 = vsyncadd %s481, 0
          %s490 = smul.addr %s19, 2
          %s491 = smul.addr %s490, 8
          %s492 = scalar_lea.hbm %s3, %s491
          %s493 = sshll.u32 %s484, 4
          %s494 = int_to_ptr.vmem [resolvable:$true] %s493
          %s495 = sshll.u32 %s492, 4
          %s496 = int_to_ptr.hbm [resolvable:$true] %s495
          %501 = dma.vmem_to_hbm [thread:$0]  %s494, 256, %s496, %s481, 128, 128, 8
        $region44: #{tpu_custom_call.1} parent=31 // pred_fallthru
          _
      $region32: #{tpu_custom_call.1} parent=5 // pred_fallthru
        _
      %p502 = scmp.le.s32.totalorder 2, %s14
      // Predicated region
      $region45: #{tpu_custom_call.1} parent=5 // pred_check
        %p503 = pneg %p502
      $region46: #{tpu_custom_call.1} parent=5 // pred_check_branch
        %505 = sbr.rel (%p503) target = $region48
      $region47: #{tpu_custom_call.1} parent=5 // pred_region
        %s506 = ssub.s32 %s14, 2
        // Predicated region
        $region49: #{tpu_custom_call.1} parent=47 // pred_check
          %p507 = pneg %p111
        $region50: #{tpu_custom_call.1} parent=47 // pred_check_branch
          %509 = sbr.rel (%p507) target = $region52
        $region51: #{tpu_custom_call.1} parent=47 // pred_region
          %s510 = sand.u32 %s96, 1
          %s511 = scalar_lea.sflag [#allocation6], %s510
          %s512 = sand.u32 %s96, 1
          %s513 = smul.addr %s512, 16
          %s514 = scalar_lea.vmem [#allocation9], %s513
          %516 = dma.done %s511, 256
        $region52: #{tpu_custom_call.1} parent=47 // pred_fallthru
          _
      $region48: #{tpu_custom_call.1} parent=5 // pred_fallthru
        _
    $region6: #{tpu_custom_call.1} parent=1 // loop_footer
      %s18 = sadd.s32 1, %s14
    $region7: #{tpu_custom_call.1} parent=1 // loop_footer_branch
      %13 = sbr.rel target = $region3
    $region8: #{tpu_custom_call.1} parent=1 // loop_exit
      _
    %517 = vsyncpa [#allocation5], 1
    %s518 = scalar_lea.sflag [#allocation5], 1
    %519 = vsyncpa %s518, 1
    %520 = vsyncpa [#allocation8], 1
    %521 = vsyncpa [#allocation6], 1
    %s522 = scalar_lea.sflag [#allocation6], 1
    %523 = vsyncpa %s522, 1

</llo_original>
